<compile_context>
chip_gen: v5e
topology: v5e:2x2
jax: 0.10.0
libtpu: 0.0.40
codegen_flags: <defaults>
</compile_context>

<pallas_src>
import functools

import jax
import jax.numpy as jnp
from jax import lax
from jax.experimental import pallas as pl
from jax.experimental.pallas import tpu as pltpu

LANE = 128
TILE_R_MAX = 2048   # rows per grid block: 2048*128*4B = 1 MiB per input per block
CHUNK_R = 512       # rows per in-kernel sub-chunk: bounds elementwise temporaries


def _round_up(a, b):
    return -(-a // b) * b


def _detect_num_cores():
    """Best-effort TensorCores-per-chip query; falls back to 1 (correct & safe everywhere)."""
    try:
        info = pltpu.get_tpu_info()
        for attr in ("num_cores", "num_tensorcores", "tensorcores_per_chip", "cores_per_chip"):
            v = getattr(info, attr, None)
            if v:
                return max(1, int(v))
    except Exception:
        pass
    try:
        v = getattr(jax.devices()[0], "num_cores", None)
        if v:
            return max(1, int(v))
    except Exception:
        pass
    return 1


def _make_kernel(n, tile_r, chunk_r, num_chunks, tiles_per_shard, last_block, has_tail):
    full_rows = n // LANE               # rows that are entirely valid
    rem_lanes = n - full_rows * LANE    # valid lanes in row `full_rows` (0..127)

    def kernel(x_ref, t_ref, out_ref):
        s = pl.program_id(0)            # shard axis ("parallel": splits across TensorCores)
        i = pl.program_id(1)            # tile within shard ("arbitrary": accumulator resident)
        b = s * tiles_per_shard + i     # global block index

        @pl.when(i == 0)
        def _init():
            out_ref[...] = jnp.zeros_like(out_ref)

        def fold(v):
            # (chunk_r, 128) -> (8, 128): whole-vreg VPU adds, no lane/sublane crossing.
            return v.reshape(chunk_r // 8, 8, LANE).sum(axis=0)

        def chunk(c, carry, masked):
            a_pt, a_pts, a_bce = carry
            r0 = c * chunk_r
            if not isinstance(r0, int):
                r0 = pl.multiple_of(r0, chunk_r)
            x = x_ref[pl.ds(r0, chunk_r), :].astype(jnp.float32)
            t = t_ref[pl.ds(r0, chunk_r), :].astype(jnp.float32)

            # Numerically stable sigmoid / softplus sharing one exp:
            #   a = exp(-|x|) in (0, 1]           (never overflows)
            #   sigmoid(x) = 1/(1+a) if x >= 0 else a/(1+a)
            a = jnp.exp(-jnp.abs(x))
            d = 1.0 + a
            r_ap = pl.reciprocal(d, approx=True)      # EUP seed (separate issue slot)
            rinv = r_ap * (2.0 - d * r_ap)            # one Newton step -> ~f32-exact 1/d
            p = jnp.where(x >= 0.0, rinv, a * rinv)   # sigmoid(x)
            sp = jnp.log(d)                           # log(1 + exp(-|x|))

            # BCE(p, t) = -(t*log p + (1-t)*log(1-p)) == sp + max(x,0) - t*x (exact algebra).
            # Clipping x to +-100 reproduces torch's -100 log-clamp for |x| > 100.
            xc = jnp.clip(x, -100.0, 100.0)
            bce = sp + jnp.maximum(xc, 0.0) - t * xc

            pt = p * t
            pts = p + t

            if masked:
                # Validity mask for the single tail block: lane-pad zeros and row overhang
                # past the end of the array must not contribute.  Overhang rows may contain
                # arbitrary bits, so use jnp.where (NaN/Inf-safe), not a multiply mask.
                ridx = lax.broadcasted_iota(jnp.int32, (chunk_r, LANE), 0)
                cidx = lax.broadcasted_iota(jnp.int32, (chunk_r, LANE), 1)
                grow = b * tile_r + r0 + ridx
                valid = (grow < full_rows) | ((grow == full_rows) & (cidx < rem_lanes))
                pt = jnp.where(valid, pt, 0.0)
                pts = jnp.where(valid, pts, 0.0)
                bce = jnp.where(valid, bce, 0.0)

            return (a_pt + fold(pt), a_pts + fold(pts), a_bce + fold(bce))

        def run(masked):
            zero = jnp.zeros((8, LANE), jnp.float32)
            init = (zero, zero, zero)
            if num_chunks == 1:
                acc = chunk(0, init, masked)
            else:
                acc = lax.fori_loop(0, num_chunks,
                                    lambda c, carry: chunk(c, carry, masked),
                                    init, unroll=True)
            out_ref[0, 0] += acc[0]   # intersection = sum(p * t)
            out_ref[0, 1] += acc[1]   # sum(p) + sum(t)
            out_ref[0, 2] += acc[2]   # sum(per-element BCE)

        if has_tail:
            @pl.when(b != last_block)
            def _full():
                run(False)

            @pl.when(b == last_block)
            def _tail():
                run(True)
        else:
            run(False)

    return kernel


@functools.partial(jax.jit, static_argnames=("tile_r_max", "chunk_r_max", "n_shards"))
def dice_bce_loss(inputs, targets, smooth=1.0, *,
                  tile_r_max=TILE_R_MAX, chunk_r_max=CHUNK_R, n_shards=None):
    n = inputs.size

    rows_min = -(-n // LANE)
    if rows_min * LANE == n:
        # Lane-aligned: zero-copy lane-dense view.  Tile alignment is handled by letting the
        # last grid block overhang the array (masked in-kernel) -- no jnp.pad copy at all.
        rows = rows_min
        xf = inputs.reshape(rows, LANE)
        tf = targets.reshape(rows, LANE)
    else:
        # Not lane-aligned: a copy is unavoidable for a lane-dense view; pad with < 1 KiB of
        # zeros (rounded to a sublane multiple).  Padded elements are masked in-kernel.
        rows = _round_up(rows_min, 8)
        pad = rows * LANE - n
        xf = jnp.pad(inputs.reshape(-1), (0, pad)).reshape(rows, LANE)
        tf = jnp.pad(targets.reshape(-1), (0, pad)).reshape(rows, LANE)

    rows8 = _round_up(rows, 8)
    chunk_cap = max(8, _round_up(min(chunk_r_max, tile_r_max), 8))
    if rows8 <= chunk_cap:
        tile_r = chunk_r = rows8
    else:
        chunk_r = chunk_cap
        tile_r = min(_round_up(rows8, chunk_r),
                     max(chunk_r, (tile_r_max // chunk_r) * chunk_r))
    num_chunks = tile_r // chunk_r
    num_tiles = -(-rows // tile_r)
    has_tail = num_tiles * tile_r * LANE > n
    last_block = num_tiles - 1

    cores = _detect_num_cores() if n_shards is None else int(n_shards)
    shards = 2 if (cores >= 2 and num_tiles >= 2 and num_tiles % 2 == 0) else 1
    tiles_per_shard = num_tiles // shards

    kernel = _make_kernel(n, tile_r, chunk_r, num_chunks, tiles_per_shard,
                          last_block, has_tail)

    partials = pl.pallas_call(
        kernel,
        out_shape=jax.ShapeDtypeStruct((shards, 3, 8, LANE), jnp.float32),
        grid_spec=pltpu.PrefetchScalarGridSpec(
            num_scalar_prefetch=0,
            grid=(shards, tiles_per_shard),
            in_specs=[
                pl.BlockSpec((tile_r, LANE), lambda s, i: (s * tiles_per_shard + i, 0)),
                pl.BlockSpec((tile_r, LANE), lambda s, i: (s * tiles_per_shard + i, 0)),
            ],
            out_specs=pl.BlockSpec((1, 3, 8, LANE), lambda s, i: (s, 0, 0, 0)),
        ),
        compiler_params=pltpu.CompilerParams(
            dimension_semantics=("parallel", "arbitrary"),
            vmem_limit_bytes=32 * 1024 * 1024,
        ),
    )(xf, tf)

    sums = jnp.sum(partials, axis=(0, 2, 3))          # (3,)
    intersection, p_plus_t, bce_sum = sums[0], sums[1], sums[2]

    dice_loss = 1.0 - (2.0 * intersection + smooth) / (p_plus_t + smooth)
    bce = bce_sum / n
    return bce + dice_loss


def _reference(inputs, targets, smooth=1.0):
    # Mirrors the torch module: sigmoid -> Dice + binary_cross_entropy (log clamp -100), mean.
    p = jax.nn.sigmoid(inputs.astype(jnp.float32)).reshape(-1)
    t = targets.astype(jnp.float32).reshape(-1)
    inter = jnp.sum(p * t)
    dice = 1.0 - (2.0 * inter + smooth) / (jnp.sum(p) + jnp.sum(t) + smooth)
    log_p = jnp.maximum(jnp.log(p), -100.0)
    log_1p = jnp.maximum(jnp.log(1.0 - p), -100.0)
    bce = jnp.mean(-(t * log_p + (1.0 - t) * log_1p))
    return bce + dice


if __name__ == "__main__":
    key = jax.random.PRNGKey(0)
    ks = jax.random.split(key, 8)

    def check(x, t, **kw):
        out = jax.block_until_ready(dice_bce_loss(x, t, **kw))
        ref = jax.block_until_ready(_reference(x, t))
        assert jnp.allclose(out, ref, rtol=1e-4, atol=1e-4), (out, ref)

    # 1) NCHW segmentation-style logits + binary masks (lane-aligned, single block, no mask).
    x1 = jax.random.normal(ks[0], (2, 4, 16, 16), dtype=jnp.float32)
    t1 = jax.random.bernoulli(ks[1], 0.5, (2, 4, 16, 16)).astype(jnp.float32)
    check(x1, t1)

    # 2) Lane-unaligned shape: exercises the tiny zero-pad + in-kernel validity mask.
    x2 = jax.random.normal(ks[2], (2, 3, 15, 17), dtype=jnp.float32)
    t2 = jax.random.bernoulli(ks[3], 0.3, (2, 3, 15, 17)).astype(jnp.float32)
    check(x2, t2)

    # 3) Multi-tile + in-kernel chunk loop + overhanging (masked) last block, no padding copy.
    x3 = jax.random.normal(ks[4], (2, 4, 32, 33), dtype=jnp.float32)
    t3 = jax.random.bernoulli(ks[5], 0.5, (2, 4, 32, 33)).astype(jnp.float32)
    check(x3, t3, tile_r_max=32, chunk_r_max=16)

    # 4) Forced two-shard "parallel" path (correct on 1-core chips, 2x split on 2-core chips).
    x4 = jax.random.normal(ks[6], (2, 4, 32, 32), dtype=jnp.float32)
    t4 = jax.random.bernoulli(ks[7], 0.5, (2, 4, 32, 32)).astype(jnp.float32)
    check(x4, t4, tile_r_max=32, chunk_r_max=32, n_shards=2)

    print("KERNEL_OK")
</pallas_src>

<mosaic_0001>
module attributes {stable_mosaic.version = 11 : i64} {
  func.func @kernel(%arg0: i32, %arg1: i32, %arg2: memref<16x128xf32, #tpu.memory_space<vmem>>, %arg3: memref<16x128xf32, #tpu.memory_space<vmem>>, %arg4: memref<1x3x8x128xf32, #tpu.memory_space<vmem>>) attributes {dimension_semantics = [#tpu.dimension_semantics<parallel>, #tpu.dimension_semantics<arbitrary>], iteration_bounds = array<i64: 1, 1>, scalar_prefetch = 0 : i64, scratch_operands = 0 : i64, tpu.core_type = #tpu.core_type<tc>, window_params = [{transform_indices = @transform_0, window_bounds = array<i64: 16, 128>}, {transform_indices = @transform_1, window_bounds = array<i64: 16, 128>}, {transform_indices = @transform_2, window_bounds = array<i64: 1, 3, 8, 128>}]} {
    %c0_i32 = arith.constant 0 : i32
    %0 = arith.cmpi eq, %arg1, %c0_i32 : i32
    %1 = arith.extui %0 : i1 to i32
    %c0_i32_0 = arith.constant 0 : i32
    %2 = arith.cmpi ne, %1, %c0_i32_0 : i32
    scf.if %2 {
      %cst_36 = arith.constant 0.000000e+00 : f32
      %60 = vector.broadcast %cst_36 : f32 to vector<1x3x8x128xf32>
      %c0_37 = arith.constant 0 : index
      %c0_38 = arith.constant 0 : index
      %c0_39 = arith.constant 0 : index
      %c0_40 = arith.constant 0 : index
      %61 = vector.load %arg4[%c0_37, %c0_38, %c0_39, %c0_40] : memref<1x3x8x128xf32, #tpu.memory_space<vmem>>, vector<1x3x8x128xf32>
      tpu.vector_store %arg4[%c0_37, %c0_38, %c0_39, %c0_40], %60 {strides = array<i32>} : memref<1x3x8x128xf32, #tpu.memory_space<vmem>>, vector<1x3x8x128xf32>,
    } else {
    }
    %cst = arith.constant 0.000000e+00 : f32
    %3 = vector.broadcast %cst : f32 to vector<8x128xf32>
    %c0 = arith.constant 0 : index
    %c0_1 = arith.constant 0 : index
    %4 = vector.load %arg2[%c0, %c0_1] : memref<16x128xf32, #tpu.memory_space<vmem>>, vector<16x128xf32>
    %c0_2 = arith.constant 0 : index
    %c0_3 = arith.constant 0 : index
    %5 = vector.load %arg3[%c0_2, %c0_3] : memref<16x128xf32, #tpu.memory_space<vmem>>, vector<16x128xf32>
    %6 = math.absf %4 : vector<16x128xf32>
    %cst_4 = arith.constant 0.000000e+00 : f32
    %7 = vector.broadcast %cst_4 : f32 to vector<16x128xf32>
    %8 = arith.subf %7, %6 : vector<16x128xf32>
    %9 = math.exp %8 : vector<16x128xf32>
    %cst_5 = arith.constant 1.000000e+00 : f32
    %10 = vector.broadcast %cst_5 : f32 to vector<16x128xf32>
    %11 = arith.addf %10, %9 : vector<16x128xf32>
    %12 = tpu.reciprocal %11 {approx = true} : vector<16x128xf32> -> vector<16x128xf32>
    %13 = arith.mulf %11, %12 : vector<16x128xf32>
    %cst_6 = arith.constant 2.000000e+00 : f32
    %14 = vector.broadcast %cst_6 : f32 to vector<16x128xf32>
    %15 = arith.subf %14, %13 : vector<16x128xf32>
    %16 = arith.mulf %12, %15 : vector<16x128xf32>
    %cst_7 = arith.constant 0.000000e+00 : f32
    %17 = vector.broadcast %cst_7 : f32 to vector<16x128xf32>
    %18 = arith.cmpf oge, %4, %17 : vector<16x128xf32>
    %19 = arith.mulf %9, %16 : vector<16x128xf32>
    %20 = arith.select %18, %16, %19 : vector<16x128xi1>, vector<16x128xf32>
    %21 = math.log %11 : vector<16x128xf32>
    %cst_8 = arith.constant -1.000000e+02 : f32
    %cst_9 = arith.constant 1.000000e+02 : f32
    %22 = vector.broadcast %cst_8 : f32 to vector<16x128xf32>
    %23 = arith.maximumf %22, %4 : vector<16x128xf32>
    %24 = vector.broadcast %cst_9 : f32 to vector<16x128xf32>
    %25 = arith.minimumf %24, %23 : vector<16x128xf32>
    %cst_10 = arith.constant 0.000000e+00 : f32
    %26 = vector.broadcast %cst_10 : f32 to vector<16x128xf32>
    %27 = arith.maximumf %25, %26 : vector<16x128xf32>
    %28 = arith.addf %21, %27 : vector<16x128xf32>
    %29 = arith.mulf %5, %25 : vector<16x128xf32>
    %30 = arith.subf %28, %29 : vector<16x128xf32>
    %31 = arith.mulf %20, %5 : vector<16x128xf32>
    %32 = arith.addf %20, %5 : vector<16x128xf32>
    %33 = vector.shape_cast %31 : vector<16x128xf32> to vector<2x8x128xf32>
    %cst_11 = arith.constant dense<0.000000e+00> : vector<8x128xf32>
    %34 = vector.multi_reduction <add>, %33, %cst_11 [0] : vector<2x8x128xf32> to vector<8x128xf32>
    %35 = arith.addf %3, %34 : vector<8x128xf32>
    %36 = vector.shape_cast %32 : vector<16x128xf32> to vector<2x8x128xf32>
    %cst_12 = arith.constant dense<0.000000e+00> : vector<8x128xf32>
    %37 = vector.multi_reduction <add>, %36, %cst_12 [0] : vector<2x8x128xf32> to vector<8x128xf32>
    %38 = arith.addf %3, %37 : vector<8x128xf32>
    %39 = vector.shape_cast %30 : vector<16x128xf32> to vector<2x8x128xf32>
    %cst_13 = arith.constant dense<0.000000e+00> : vector<8x128xf32>
    %40 = vector.multi_reduction <add>, %39, %cst_13 [0] : vector<2x8x128xf32> to vector<8x128xf32>
    %41 = arith.addf %3, %40 : vector<8x128xf32>
    %c0_14 = arith.constant 0 : index
    %c0_15 = arith.constant 0 : index
    %c0_16 = arith.constant 0 : index
    %c0_17 = arith.constant 0 : index
    %42 = vector.load %arg4[%c0_14, %c0_15, %c0_16, %c0_17] : memref<1x3x8x128xf32, #tpu.memory_space<vmem>>, vector<1x1x8x128xf32>
    %43 = vector.shape_cast %42 : vector<1x1x8x128xf32> to vector<8x128xf32>
    %44 = arith.addf %43, %35 : vector<8x128xf32>
    %c0_18 = arith.constant 0 : index
    %c0_19 = arith.constant 0 : index
    %c0_20 = arith.constant 0 : index
    %c0_21 = arith.constant 0 : index
    %45 = vector.load %arg4[%c0_18, %c0_19, %c0_20, %c0_21] : memref<1x3x8x128xf32, #tpu.memory_space<vmem>>, vector<1x1x8x128xf32>
    %46 = vector.shape_cast %45 : vector<1x1x8x128xf32> to vector<8x128xf32>
    %47 = vector.shape_cast %44 : vector<8x128xf32> to vector<1x1x8x128xf32>
    tpu.vector_store %arg4[%c0_18, %c0_19, %c0_20, %c0_21], %47 {strides = array<i32>} : memref<1x3x8x128xf32, #tpu.memory_space<vmem>>, vector<1x1x8x128xf32>,
    %c0_22 = arith.constant 0 : index
    %c1 = arith.constant 1 : index
    %c0_23 = arith.constant 0 : index
    %c0_24 = arith.constant 0 : index
    %48 = vector.load %arg4[%c0_22, %c1, %c0_23, %c0_24] : memref<1x3x8x128xf32, #tpu.memory_space<vmem>>, vector<1x1x8x128xf32>
    %49 = vector.shape_cast %48 : vector<1x1x8x128xf32> to vector<8x128xf32>
    %50 = arith.addf %49, %38 : vector<8x128xf32>
    %c0_25 = arith.constant 0 : index
    %c1_26 = arith.constant 1 : index
    %c0_27 = arith.constant 0 : index
    %c0_28 = arith.constant 0 : index
    %51 = vector.load %arg4[%c0_25, %c1_26, %c0_27, %c0_28] : memref<1x3x8x128xf32, #tpu.memory_space<vmem>>, vector<1x1x8x128xf32>
    %52 = vector.shape_cast %51 : vector<1x1x8x128xf32> to vector<8x128xf32>
    %53 = vector.shape_cast %50 : vector<8x128xf32> to vector<1x1x8x128xf32>
    tpu.vector_store %arg4[%c0_25, %c1_26, %c0_27, %c0_28], %53 {strides = array<i32>} : memref<1x3x8x128xf32, #tpu.memory_space<vmem>>, vector<1x1x8x128xf32>,
    %c0_29 = arith.constant 0 : index
    %c2 = arith.constant 2 : index
    %c0_30 = arith.constant 0 : index
    %c0_31 = arith.constant 0 : index
    %54 = vector.load %arg4[%c0_29, %c2, %c0_30, %c0_31] : memref<1x3x8x128xf32, #tpu.memory_space<vmem>>, vector<1x1x8x128xf32>
    %55 = vector.shape_cast %54 : vector<1x1x8x128xf32> to vector<8x128xf32>
    %56 = arith.addf %55, %41 : vector<8x128xf32>
    %c0_32 = arith.constant 0 : index
    %c2_33 = arith.constant 2 : index
    %c0_34 = arith.constant 0 : index
    %c0_35 = arith.constant 0 : index
    %57 = vector.load %arg4[%c0_32, %c2_33, %c0_34, %c0_35] : memref<1x3x8x128xf32, #tpu.memory_space<vmem>>, vector<1x1x8x128xf32>
    %58 = vector.shape_cast %57 : vector<1x1x8x128xf32> to vector<8x128xf32>
    %59 = vector.shape_cast %56 : vector<8x128xf32> to vector<1x1x8x128xf32>
    tpu.vector_store %arg4[%c0_32, %c2_33, %c0_34, %c0_35], %59 {strides = array<i32>} : memref<1x3x8x128xf32, #tpu.memory_space<vmem>>, vector<1x1x8x128xf32>,
    return
  }
  func.func @transform_0(%arg0: i32, %arg1: i32) -> (i32, i32) {
    %c1_i32 = arith.constant 1 : i32
    %0 = arith.muli %arg0, %c1_i32 : i32
    %1 = arith.addi %0, %arg1 : i32
    %c0_i32 = arith.constant 0 : i32
    %c0_i32_0 = arith.constant 0 : i32
    return %1, %c0_i32 : i32, i32
  }
  func.func @transform_1(%arg0: i32, %arg1: i32) -> (i32, i32) {
    %c1_i32 = arith.constant 1 : i32
    %0 = arith.muli %arg0, %c1_i32 : i32
    %1 = arith.addi %0, %arg1 : i32
    %c0_i32 = arith.constant 0 : i32
    %c0_i32_0 = arith.constant 0 : i32
    return %1, %c0_i32 : i32, i32
  }
  func.func @transform_2(%arg0: i32, %arg1: i32) -> (i32, i32, i32, i32) {
    %c0_i32 = arith.constant 0 : i32
    %c0_i32_0 = arith.constant 0 : i32
    %c0_i32_1 = arith.constant 0 : i32
    %c0_i32_2 = arith.constant 0 : i32
    return %arg0, %c0_i32, %c0_i32_0, %c0_i32_1 : i32, i32, i32, i32
  }
}

</mosaic_0001>

<llo_original>
// kernel: dice_bce_loss.1
$region0: #{dice_bce_loss.1}
  #allocation0 [shape = 'u32[]', space=smem, size = 0x4, offset = 0x4, fixed_abs, tag = 'smem constant byte address 0x4 - core index']
  #allocation1 [shape = 'u32[72,128]{1,0:T(1,128)}', space=vmem, size = 0x9000, scoped, tag = 'internal scratch']
  %s0 = inlined_call_operand.vmem [shape: f32[16,128], index: 0, kind: input, shape index: {}]
  %s1 = inlined_call_operand.vmem [shape: f32[16,128], index: 1, kind: input, shape index: {}]
  %s2 = inlined_call_operand.vmem [shape: f32[1,3,8,128], index: 2, kind: output, shape index: {}]
  %s3 = sld [smem:[#allocation0]]
  $region22: #{dice_bce_loss.1} parent=0
    _
  %s5 = ssub.s32 1, %s3
  %s6 = scalar_select 0, %s5, %s3
  // Predicated region
  $region2: #{dice_bce_loss.1} parent=0 // pred_check
    _
  $region3: #{dice_bce_loss.1} parent=0 // pred_check_branch
    %8 = sbr.rel (0) target = $region5
  $region4: #{dice_bce_loss.1} parent=0 // pred_region
    %s9 = sadd.s32 0, 0
    %s10 = smul.u32 2, %s9
    %p11 = scmp.lt.s32.totalorder %s10, 1
    %s12 = scalar_select %p11, %s10, 1
    %s13 = smul.addr %s12, 8
    %s14 = scalar_lea.vmem %s0, %s13
    %s15 = sadd.s32 0, 0
    %s16 = smul.u32 2, %s15
  $region5: #{dice_bce_loss.1} parent=0 // pred_fallthru
    _
  // Predicated region
  $region6: #{dice_bce_loss.1} parent=0 // pred_check
    _
  $region7: #{dice_bce_loss.1} parent=0 // pred_check_branch
    %18 = sbr.rel (0) target = $region9
  $region8: #{dice_bce_loss.1} parent=0 // pred_region
    %s19 = sadd.s32 0, 0
    %s20 = smul.u32 2, %s19
    %p21 = scmp.lt.s32.totalorder %s20, 1
    %s22 = scalar_select %p21, %s20, 1
    %s23 = smul.addr %s22, 8
    %s24 = scalar_lea.vmem %s1, %s23
    %s25 = sadd.s32 0, 0
    %s26 = smul.u32 2, %s25
  $region9: #{dice_bce_loss.1} parent=0 // pred_fallthru
    _
  %s27 = sadd.s32 0, 0
  %s28 = smul.u32 2, %s27
  %p29 = scmp.lt.s32.totalorder %s28, 1
  %s30 = scalar_select %p29, %s28, 1
  %s31 = smul.addr %s30, 8
  %s32 = scalar_lea.vmem %s0, %s31
  %s33 = sadd.s32 0, 0
  %s34 = smul.u32 2, %s33
  %p35 = scmp.lt.s32.totalorder %s34, 1
  %s36 = scalar_select %p35, %s34, 1
  %s37 = smul.addr %s36, 8
  %s38 = scalar_lea.vmem %s1, %s37
  %s39 = sadd.s32 0, 0
  %s40 = smul.u32 2, %s39
  %p41 = scmp.lt.s32.totalorder %s40, 1
  %s42 = scalar_select %p41, %s40, 1
  %s43 = smul.addr %s42, 8
  %s44 = scalar_lea.vmem %s0, %s43
  %s45 = sadd.s32 0, 0
  %s46 = smul.u32 2, %s45
  %s47 = sadd.s32 0, 0
  %s48 = smul.u32 2, %s47
  %p49 = scmp.lt.s32.totalorder %s48, 1
  %s50 = scalar_select %p49, %s48, 1
  %s51 = smul.addr %s50, 8
  %s52 = scalar_lea.vmem %s1, %s51
  %s53 = sadd.s32 0, 0
  %s54 = smul.u32 2, %s53
  %p55 = scmp.eq.s32.totalorder 0, 0
  // Predicated region
  $region10: #{dice_bce_loss.1} parent=0 // pred_check
    %p56 = pneg %p55
  $region11: #{dice_bce_loss.1} parent=0 // pred_check_branch
    %58 = sbr.rel (%p56) target = $region13
  $region12: #{dice_bce_loss.1} parent=0 // pred_region
    %59 = vst [vmem:[%s2] sm:$0xff] 0.0
    %60 = vst [vmem:[%s2 + $0x8] sm:$0xff] 0.0
    %61 = vst [vmem:[%s2 + $0x10] sm:$0xff] 0.0
  $region13: #{dice_bce_loss.1} parent=0 // pred_fallthru
    _
  %v62 = vld [vmem:[%s44] sm:$0xff]
  %v63 = vld [vmem:[%s44 + $0x8] sm:$0xff]
  %v64 = vld [vmem:[%s52] sm:$0xff]
  %v65 = vld [vmem:[%s52 + $0x8] sm:$0xff]
  %v66 = vand.u32 2147483647, %v62
  %v67 = vand.u32 2147483647, %v63
  %v68 = vsub.f32 0.0, %v66
  %v69 = vsub.f32 0.0, %v67
  %v70 = vmul.f32 %v68, 1.442695
  %v71 = vpow.pop %v70
  %v72 = vmul.f32 %v69, 1.442695
  %v73 = vpow.pop %v72
  %v74 = vadd.f32 %v71, 1.0
  %v75 = vadd.f32 %v73, 1.0
  %v76 = vrcp.pop %v74
  %v77 = vrcp.pop %v75
  %v78 = vmul.f32 %v74, %v76
  %v79 = vmul.f32 %v75, %v77
  %v80 = vsub.f32 2.0, %v78
  %v81 = vsub.f32 2.0, %v79
  %v82 = vmul.f32 %v76, %v80
  %v83 = vmul.f32 %v77, %v81
  %vm84 = vcmp.ge.f32.partialorder %v62, 0.0
  %vm85 = vcmp.ge.f32.partialorder %v63, 0.0
  %v86 = vmul.f32 %v71, %v82
  %v87 = vmul.f32 %v73, %v83
  %v88 = vsel %vm84, %v82, %v86
  %v89 = vsel %vm85, %v83, %v87
  %v90 = vlog2.pop %v74
  %v91 = vmul.f32 %v90, 0.6931472
  %v92 = vlog2.pop %v75
  %v93 = vmul.f32 %v92, 0.6931472
  %v94 = vmax.f32 %v62, -100.0
  %v95 = vmax.f32 %v63, -100.0
  %v96 = vmin.f32 %v94, 100.0
  %v97 = vmin.f32 %v95, 100.0
  %v98 = vmax.f32 %v96, 0.0
  %v99 = vmax.f32 %v97, 0.0
  %v100 = vadd.f32 %v91, %v98
  %v101 = vadd.f32 %v93, %v99
  %v102 = vmul.f32 %v64, %v96
  %v103 = vmul.f32 %v65, %v97
  %v104 = vsub.f32 %v100, %v102
  %v105 = vsub.f32 %v101, %v103
  %v106 = vmul.f32 %v88, %v64
  %v107 = vmul.f32 %v89, %v65
  %v108 = vadd.f32 %v88, %v64
  %v109 = vadd.f32 %v89, %v65
  %v110 = vadd.f32 %v106, %v107
  %v111 = vadd.f32 %v110, 0.0
  %v112 = vadd.f32 %v108, %v109
  %v113 = vadd.f32 %v112, 0.0
  %v114 = vadd.f32 %v104, %v105
  %v115 = vadd.f32 %v114, 0.0
  %v116 = vld [vmem:[%s2] sm:$0xff]
  %v117 = vadd.f32 %v116, %v111
  %118 = vst [vmem:[%s2] sm:$0xff] %v117
  %s119 = scalar_lea.vmem %s2, 8
  %v120 = vld [vmem:[%s119] sm:$0xff]
  %v121 = vadd.f32 %v120, %v113
  %122 = vst [vmem:[%s119] sm:$0xff] %v121
  %s123 = scalar_lea.vmem %s2, 16
  %v124 = vld [vmem:[%s123] sm:$0xff]
  %v125 = vadd.f32 %v124, %v115
  %126 = vst [vmem:[%s123] sm:$0xff] %v125
  // Predicated region
  $region14: #{dice_bce_loss.1} parent=0 // pred_check
    _
  $region15: #{dice_bce_loss.1} parent=0 // pred_check_branch
    %128 = sbr.rel (0) target = $region17
  $region16: #{dice_bce_loss.1} parent=0 // pred_region
    _
  $region17: #{dice_bce_loss.1} parent=0 // pred_fallthru
    _
  // Predicated region
  $region18: #{dice_bce_loss.1} parent=0 // pred_check
    _
  $region19: #{dice_bce_loss.1} parent=0 // pred_check_branch
    %130 = sbr.rel (0) target = $region21
  $region20: #{dice_bce_loss.1} parent=0 // pred_region
    _
  $region21: #{dice_bce_loss.1} parent=0 // pred_fallthru
    _

</llo_original>
